<compile_context>
chip_gen: v7x
topology: tpu7x:2x2x1
jax: 0.10.0
libtpu: 0.0.40
codegen_flags: <defaults>
</compile_context>

<pallas_src>
import random

import jax
import jax.numpy as jnp
from jax.experimental import pallas as pl
from jax.experimental.pallas import tpu as pltpu


# Inputs at or below this size go through a single full-array block (no grid).
_SMALL_BYTES = 1 * 1024 * 1024
# Target VMEM block size for the tiled path (~8 MiB).
_TARGET_BLOCK_BYTES = 8 * 1024 * 1024
_VMEM_LIMIT_BYTES = 48 * 1024 * 1024


def _make_threshold_kernel(threshold, value):
    """Elementwise kernel with threshold/value baked in as compile-time constants."""
    def kernel(x_ref, o_ref):
        x = x_ref[...]
        o_ref[...] = jnp.where(x > threshold, x, jnp.asarray(value, dtype=x.dtype))
    return kernel


def _threshold_tiled_2d(x2, kernel):
    """Gridded, lane-dense streaming path over a (rows, lanes) slab."""
    rows, lanes = x2.shape
    itemsize = jnp.dtype(x2.dtype).itemsize
    # Packed-sublane granularity: 8 for 32-bit, 16 for bf16, 32 for int8/fp8.
    sub = max(8, 32 // itemsize)
    target_rows = max(sub, (_TARGET_BLOCK_BYTES // (lanes * itemsize)) // sub * sub)
    # Guarantee >= 4 blocks so each v7x TensorCore pipelines at least 2 blocks.
    quarter_rows = ((pl.cdiv(rows, 4) + sub - 1) // sub) * sub
    tile_rows = max(sub, min(target_rows, quarter_rows))
    grid = (pl.cdiv(rows, tile_rows),)  # ragged edge block: Pallas bounds the edge DMA
    return pl.pallas_call(
        kernel,
        out_shape=jax.ShapeDtypeStruct((rows, lanes), x2.dtype),
        grid=grid,
        in_specs=[pl.BlockSpec((tile_rows, lanes), lambda i: (i, 0))],
        out_specs=pl.BlockSpec((tile_rows, lanes), lambda i: (i, 0)),
        compiler_params=pltpu.CompilerParams(
            dimension_semantics=("parallel",),
            vmem_limit_bytes=_VMEM_LIMIT_BYTES,
        ),
    )(x2)


def threshold_pallas(x, threshold, value):
    """Apply nn.Threshold semantics to x (any shape) via a Pallas TPU kernel."""
    threshold = float(threshold)
    value = float(value)
    orig_shape = x.shape
    n = x.size
    if n == 0:
        return x

    kernel = _make_threshold_kernel(threshold, value)
    itemsize = jnp.dtype(x.dtype).itemsize

    # ---------- small path: one lane-dense full-array block, no grid ----------
    if n * itemsize <= _SMALL_BYTES:
        pad = (-n) % 128
        x_flat = x.reshape(-1)
        if pad:
            # <128 elements of pad on a <=1 MiB input: negligible, keeps lanes dense.
            x_flat = jnp.pad(x_flat, (0, pad))
        x2 = x_flat.reshape((n + pad) // 128, 128)
        out2 = pl.pallas_call(
            kernel,
            out_shape=jax.ShapeDtypeStruct(x2.shape, x.dtype),
            compiler_params=pltpu.CompilerParams(
                vmem_limit_bytes=_VMEM_LIMIT_BYTES,
            ),
        )(x2)
        out_flat = out2.reshape(-1)
        if pad:
            out_flat = out_flat[:n]
        return out_flat.reshape(orig_shape)

    # ---------- large path: lane-dense tiled pipeline, no wrapper pad copies ----------
    if n % 512 == 0:
        lanes = 512
    elif n % 256 == 0:
        lanes = 256
    elif n % 128 == 0:
        lanes = 128
    else:
        lanes = 0

    if lanes:
        out2 = _threshold_tiled_2d(x.reshape(n // lanes, lanes), kernel)
        return out2.reshape(orig_shape)

    # Unaligned large input (rare): stream the 512-aligned bulk through the tiled
    # kernel and finish the <512-element tail with a tiny elementwise where.
    # TODO(synk): avoid the final concatenate copy if this path ever becomes hot.
    x_flat = x.reshape(-1)
    bulk = (n // 512) * 512
    bulk_out = _threshold_tiled_2d(x_flat[:bulk].reshape(bulk // 512, 512), kernel)
    tail = x_flat[bulk:]
    tail_out = jnp.where(tail > threshold, tail, jnp.asarray(value, dtype=x.dtype))
    out_flat = jnp.concatenate([bulk_out.reshape(-1), tail_out])
    return out_flat.reshape(orig_shape)


if __name__ == "__main__":
    # Deterministic "module init": mirrors LayerThresholdTest.__init__
    random.seed(0)
    threshold = random.random()
    value = threshold + random.random()

    key = jax.random.PRNGKey(0)

    # Small NCHW conv-style tensor (single-block path).
    x = jax.random.normal(key, (2, 4, 16, 16), dtype=jnp.float32)
    y = jax.block_until_ready(threshold_pallas(x, threshold, value))
    y_ref = jnp.where(x > threshold, x, jnp.float32(value))
    assert y.shape == x.shape and y.dtype == x.dtype
    assert jnp.array_equal(y, y_ref), "mismatch vs reference (small path)"

    # Unaligned small tensor (padded single-block path).
    xu = jax.random.normal(jax.random.PRNGKey(2), (3, 5, 7), dtype=jnp.float32)
    yu = jax.block_until_ready(threshold_pallas(xu, threshold, value))
    yu_ref = jnp.where(xu > threshold, xu, jnp.float32(value))
    assert yu.shape == xu.shape and yu.dtype == xu.dtype
    assert jnp.array_equal(yu, yu_ref), "mismatch vs reference (padded small path)"

    # Larger tensor exercising the gridded "parallel" tiled path.
    xl = jax.random.normal(jax.random.PRNGKey(1), (8, 16, 128, 128), dtype=jnp.float32)
    yl = jax.block_until_ready(threshold_pallas(xl, threshold, value))
    yl_ref = jnp.where(xl > threshold, xl, jnp.float32(value))
    assert yl.shape == xl.shape and yl.dtype == xl.dtype
    assert jnp.array_equal(yl, yl_ref), "mismatch vs reference (tiled path)"

    print("KERNEL_OK")
</pallas_src>

<mosaic_0001>
module attributes {stable_mosaic.version = 11 : i64} {
  func.func @kernel(%arg0: memref<16x128xf32, #tpu.memory_space<vmem>>, %arg1: memref<16x128xf32, #tpu.memory_space<vmem>>) attributes {dimension_semantics = [], scalar_prefetch = 0 : i64, scratch_operands = 0 : i64, tpu.core_type = #tpu.core_type<tc>} {
    %c0 = arith.constant 0 : index
    %c0_0 = arith.constant 0 : index
    %0 = vector.load %arg0[%c0, %c0_0] : memref<16x128xf32, #tpu.memory_space<vmem>>, vector<16x128xf32>
    %cst = arith.constant 0.844421863 : f32
    %1 = vector.broadcast %cst : f32 to vector<16x128xf32>
    %2 = arith.cmpf ogt, %0, %1 : vector<16x128xf32>
    %cst_1 = arith.constant 1.60237622 : f32
    %3 = vector.broadcast %cst_1 : f32 to vector<16x128xf32>
    %4 = arith.select %2, %0, %3 : vector<16x128xi1>, vector<16x128xf32>
    %c0_2 = arith.constant 0 : index
    %c0_3 = arith.constant 0 : index
    %5 = vector.load %arg1[%c0_2, %c0_3] : memref<16x128xf32, #tpu.memory_space<vmem>>, vector<16x128xf32>
    tpu.vector_store %arg1[%c0_2, %c0_3], %4 {strides = array<i32>} : memref<16x128xf32, #tpu.memory_space<vmem>>, vector<16x128xf32>,
    return
  }
}

</mosaic_0001>

<llo_original>
// kernel: tpu_custom_call.1
$region0: #{tpu_custom_call.1}
  #allocation0 [shape = 'u32[]', space=smem, size = 0x4, offset = 0x4, fixed_abs, tag = 'smem constant byte address 0x4 - core index']
  #allocation1 [shape = 'u32[144,128]{1,0:T(1,128)}', space=vmem, size = 0x12000, scoped, tag = 'internal scratch']
  %s0 = inlined_call_operand.hbm [shape: f32[16,128], index: 0, kind: input, shape index: {}]
  %s1 = inlined_call_operand.hbm [shape: f32[16,128], index: 1, kind: output, shape index: {}]
  %s2 = sld [smem:[#allocation0]]
  $region18: #{tpu_custom_call.1} parent=0
    _
  %s4 = ssub.s32 1, %s2
  %s5 = scalar_select 0, %s4, %s2
  $region1: #{tpu_custom_call.1} parent=0
    #allocation2 [shape = 'u8[8192]{0}', space=vmem, size = 0x2000, scoped, tag = 'input window, operand 0, single buffered']
    #allocation3 [shape = 's32[1]{0}', space=sflag, size = 0x4, scoped, tag = 'scoped memory for tpu_custom_call.1']
    #allocation4 [shape = 's32[1]{0}', space=sflag, size = 0x4, scoped, tag = 'scoped memory for tpu_custom_call.1']
    #allocation5 [shape = 'u8[8192]{0}', space=vmem, size = 0x2000, scoped, tag = 'output window, operand 0, single buffered']
    %6 = vsyncpa [#allocation3], 0
    %7 = vsyncpa [#allocation4], 0
    // Predicated region
    $region2: #{tpu_custom_call.1} parent=1 // pred_check
      _
    $region3: #{tpu_custom_call.1} parent=1 // pred_check_branch
      %9 = sbr.rel (0) target = $region5
    $region4: #{tpu_custom_call.1} parent=1 // pred_region
      %s11 = ssub.s32 256, 256
      %12 = vsyncadd [#allocation3], %s11
      %s13 = sshll.u32 [#allocation2], 4
      %s14 = int_to_ptr.vmem [resolvable:$true] %s13
      %19 = dma.hbm_to_vmem [thread:$0]  %s0, 256, %s14, [#allocation3], 128, 128, 8
    $region5: #{tpu_custom_call.1} parent=1 // pred_fallthru
      _
    // Predicated region
    $region6: #{tpu_custom_call.1} parent=1 // pred_check
      _
    $region7: #{tpu_custom_call.1} parent=1 // pred_check_branch
      %21 = sbr.rel (0) target = $region9
    $region8: #{tpu_custom_call.1} parent=1 // pred_region
      %22 = dma.done [#allocation3], 256
    $region9: #{tpu_custom_call.1} parent=1 // pred_fallthru
      _
    %v23 = vld [vmem:[#allocation2] sm:$0xff]
    %v24 = vld [vmem:[#allocation2 + $0x8] sm:$0xff]
    %vm25 = vcmp.gt.f32.partialorder %v23, 0.84442186
    %vm26 = vcmp.gt.f32.partialorder %v24, 0.84442186
    %v27 = vsel %vm25, %v23, 1.6023762
    %v28 = vsel %vm26, %v24, 1.6023762
    %29 = vst [vmem:[#allocation5] sm:$0xff] %v27
    %30 = vst [vmem:[#allocation5 + $0x8] sm:$0xff] %v28
    // Predicated region
    $region10: #{tpu_custom_call.1} parent=1 // pred_check
      _
    $region11: #{tpu_custom_call.1} parent=1 // pred_check_branch
      %32 = sbr.rel (0) target = $region13
    $region12: #{tpu_custom_call.1} parent=1 // pred_region
      %s34 = ssub.s32 256, 256
      %35 = vsyncadd [#allocation4], %s34
      %s36 = sshll.u32 [#allocation5], 4
      %s37 = int_to_ptr.vmem [resolvable:$true] %s36
      %42 = dma.vmem_to_hbm [thread:$0]  %s37, 256, %s1, [#allocation4], 128, 128, 8
    $region13: #{tpu_custom_call.1} parent=1 // pred_fallthru
      _
    // Predicated region
    $region14: #{tpu_custom_call.1} parent=1 // pred_check
      _
    $region15: #{tpu_custom_call.1} parent=1 // pred_check_branch
      %44 = sbr.rel (0) target = $region17
    $region16: #{tpu_custom_call.1} parent=1 // pred_region
      %45 = dma.done [#allocation4], 256
    $region17: #{tpu_custom_call.1} parent=1 // pred_fallthru
      _
    %46 = vsyncpa [#allocation3], 1
    %47 = vsyncpa [#allocation4], 1

</llo_original>
